<compile_context>
chip_gen: v7x
topology: tpu7x:2x2x1
jax: 0.10.0
libtpu: 0.0.40
codegen_flags: <defaults>
</compile_context>

<pallas_src>
import functools
import math

import jax
import jax.numpy as jnp
from jax.experimental import pallas as pl
from jax.experimental.pallas import tpu as pltpu


def _round_up(n, m):
    return ((n + m - 1) // m) * m


def _pick_batch_tile(batch):
    """Sublane-aligned batch tile.

    Large tiles amortize per-grid-step overhead (HBM roofline wants >=512
    rows/step), but keep >=2 grid steps when the batch allows so v7x's two
    TensorCores both get work.  The wrapper zero-pads the batch up to a tile
    multiple, so there is no full-batch fallback.
    """
    if batch < 16:
        return 8
    cap = min(1024, batch // 2)          # >=2 steps, and bounded VMEM on v7x
    tile = 8
    while tile * 2 <= cap:
        tile *= 2
    return tile


def _fused_mlp_kernel(x_ref, w1_ref, bs1_ref, w2_ref, bs2_ref, o_ref):
    # Layer 1 (1/in_size pre-folded into W1 / bs1):  h = x @ W1' + bs1'
    h = jnp.dot(x_ref[...], w1_ref[...], preferred_element_type=jnp.float32)
    h = jnp.maximum(h + bs1_ref[...].astype(jnp.float32), 0.0)     # f32 epilogue + ReLU
    # Layer 2 (1/hidden pre-folded into W2 / bs2):   o = h @ W2' + bs2'
    o = jnp.dot(h.astype(w2_ref.dtype), w2_ref[...],
                preferred_element_type=jnp.float32)
    o_ref[...] = (o + bs2_ref[...].astype(jnp.float32)).astype(o_ref.dtype)


def init_params(key, batch, input_size, hidden_size, num_classes,
                nonzero_bias=False):
    """Mirrors CustomLinearLayer.reset_parameters(); optional nonzero bias so
    the bias path is actually exercised in the test."""
    k1, k2, k3, k4 = jax.random.split(key, 4)

    def xavier_uniform(k, fan_in, fan_out):
        bound = math.sqrt(6.0 / (fan_in + fan_out))
        return jax.random.uniform(
            k, (fan_in, fan_out), jnp.float32, minval=-bound, maxval=bound)

    if nonzero_bias:
        b1 = 0.1 * jax.random.normal(k3, (batch, input_size, hidden_size), jnp.float32)
        b2 = 0.1 * jax.random.normal(k4, (batch, hidden_size, num_classes), jnp.float32)
    else:
        b1 = jnp.zeros((batch, input_size, hidden_size), jnp.float32)
        b2 = jnp.zeros((batch, hidden_size, num_classes), jnp.float32)

    return {
        "w1": xavier_uniform(k1, input_size, hidden_size), "b1": b1,
        "w2": xavier_uniform(k2, hidden_size, num_classes), "b2": b2,
    }


def prepare_params(params, stream_dtype=jnp.bfloat16):
    """One-time preprocessing (parameters are constant across forwards):
       - reduce the (B, in, out) biases to their per-batch sums over `in`
       - fold the 1/fan_in mean scales into weights and bias sums
       - pad ONLY the output lane dim (W2 / bs2) to a multiple of 128
       - cast streamed tensors to bf16 (matmuls still accumulate in f32).
       NOTE: if biases/weights are updated (training), re-run this."""
    w1, b1, w2, b2 = params["w1"], params["b1"], params["w2"], params["b2"]
    B, in_size, hidden = b1.shape
    num_classes = w2.shape[1]
    op = _round_up(num_classes, 128)      # lane-dense output stores only

    inv_in = 1.0 / float(in_size)
    inv_hid = 1.0 / float(hidden)

    w1p = (w1 * inv_in).astype(stream_dtype)                       # (in, hidden)
    bs1 = (jnp.sum(b1, axis=1) * inv_in).astype(stream_dtype)      # (B, hidden)
    w2p = (jnp.zeros((hidden, op), jnp.float32)
           .at[:, :num_classes].set(w2 * inv_hid)).astype(stream_dtype)
    bs2 = (jnp.zeros((B, op), jnp.float32)
           .at[:, :num_classes].set(jnp.sum(b2, axis=1) * inv_hid)
           ).astype(stream_dtype)
    return w1p, bs1, w2p, bs2


@functools.partial(jax.jit, static_argnames=("num_classes", "batch_tile"))
def neural_network_forward(x, w1p, bs1, w2p, bs2, *, num_classes, batch_tile):
    B, in_size = x.shape
    hidden = w1p.shape[1]
    op = w2p.shape[1]

    # Cast x to the streamed dtype (bf16); no 128-lane padding of x.
    x = x.astype(w1p.dtype)

    # Pad only the batch (rows of zeros) up to a tile multiple; padded rows
    # produce garbage-free zero math and are sliced off below.
    padded_B = _round_up(B, batch_tile)
    if padded_B != B:
        pad = padded_B - B
        x = jnp.pad(x, ((0, pad), (0, 0)))
        bs1 = jnp.pad(bs1, ((0, pad), (0, 0)))
        bs2 = jnp.pad(bs2, ((0, pad), (0, 0)))

    out_p = pl.pallas_call(
        _fused_mlp_kernel,
        out_shape=jax.ShapeDtypeStruct((padded_B, op), jnp.float32),
        grid=(padded_B // batch_tile,),
        in_specs=[
            pl.BlockSpec((batch_tile, in_size), lambda i: (i, 0)),   # x (unpadded lanes)
            pl.BlockSpec((in_size, hidden), lambda i: (0, 0)),       # W1/in (resident)
            pl.BlockSpec((batch_tile, hidden), lambda i: (i, 0)),    # sum(b1,1)/in
            pl.BlockSpec((hidden, op), lambda i: (0, 0)),            # W2/hid (resident)
            pl.BlockSpec((batch_tile, op), lambda i: (i, 0)),        # sum(b2,1)/hid
        ],
        out_specs=pl.BlockSpec((batch_tile, op), lambda i: (i, 0)),
        compiler_params=pltpu.CompilerParams(
            dimension_semantics=("parallel",)),                      # v7x megacore
    )(x, w1p, bs1, w2p, bs2)

    return out_p[:B, :num_classes]


def _reference_forward(x, params):
    """Pure-JAX f32 reference of the exact PyTorch semantics."""
    def layer(x, w, b):
        r = x[:, :, None] * w[None, :, :] + b
        return jnp.mean(r, axis=1)

    h = jnp.maximum(layer(x, params["w1"], params["b1"]), 0.0)
    return layer(h, params["w2"], params["b2"])


if __name__ == "__main__":
    # Small shapes consistent with the module's forward (x: (batch, input_size)).
    batch, input_size, hidden_size, num_classes = 8, 16, 32, 10

    key = jax.random.PRNGKey(0)
    k_x, k_p = jax.random.split(key)
    x = jax.random.normal(k_x, (batch, input_size), jnp.float32)
    # Nonzero biases so the bias path is actually tested (PyTorch init is zeros).
    params = init_params(k_p, batch, input_size, hidden_size, num_classes,
                         nonzero_bias=True)

    w1p, bs1, w2p, bs2 = prepare_params(params)
    batch_tile = _pick_batch_tile(batch)

    out = neural_network_forward(
        x, w1p, bs1, w2p, bs2,
        num_classes=num_classes, batch_tile=batch_tile)
    out = jax.block_until_ready(out)

    ref = _reference_forward(x, params)
    assert out.shape == (batch, num_classes)
    # bf16-streamed inputs vs f32 reference: allow ~1e-2 (observed error <~1e-3).
    max_err = float(jnp.max(jnp.abs(out - ref)))
    assert jnp.allclose(out, ref, atol=1e-2, rtol=1e-2), max_err

    print("KERNEL_OK")
</pallas_src>

<mosaic_0001>
module attributes {stable_mosaic.version = 11 : i64} {
  func.func @_fused_mlp_kernel(%arg0: i32, %arg1: memref<8x16xbf16, #tpu.memory_space<vmem>>, %arg2: memref<16x32xbf16, #tpu.memory_space<vmem>>, %arg3: memref<8x32xbf16, #tpu.memory_space<vmem>>, %arg4: memref<32x128xbf16, #tpu.memory_space<vmem>>, %arg5: memref<8x128xbf16, #tpu.memory_space<vmem>>, %arg6: memref<8x128xf32, #tpu.memory_space<vmem>>) attributes {dimension_semantics = [#tpu.dimension_semantics<parallel>], iteration_bounds = array<i64: 1>, scalar_prefetch = 0 : i64, scratch_operands = 0 : i64, tpu.core_type = #tpu.core_type<tc>, window_params = [{transform_indices = @transform_0, window_bounds = array<i64: 8, 16>}, {pipeline_mode = #tpu.pipeline_mode<synchronous>, transform_indices = @transform_1, window_bounds = array<i64: 16, 32>}, {transform_indices = @transform_2, window_bounds = array<i64: 8, 32>}, {pipeline_mode = #tpu.pipeline_mode<synchronous>, transform_indices = @transform_3, window_bounds = array<i64: 32, 128>}, {transform_indices = @transform_4, window_bounds = array<i64: 8, 128>}, {transform_indices = @transform_5, window_bounds = array<i64: 8, 128>}]} {
    %c0 = arith.constant 0 : index
    %c0_0 = arith.constant 0 : index
    %0 = vector.load %arg1[%c0, %c0_0] : memref<8x16xbf16, #tpu.memory_space<vmem>>, vector<8x16xbf16>
    %c0_1 = arith.constant 0 : index
    %c0_2 = arith.constant 0 : index
    %1 = vector.load %arg2[%c0_1, %c0_2] : memref<16x32xbf16, #tpu.memory_space<vmem>>, vector<16x32xbf16>
    %cst = arith.constant dense<0.000000e+00> : vector<8x32xf32>
    %2 = tpu.matmul %0, %1, %cst {dimension_numbers = #tpu.dot_dimension_numbers<[1], [0], [0], [1], [0, 0, 1, 1], [], []>} : vector<8x16xbf16>, vector<16x32xbf16>, vector<8x32xf32> -> vector<8x32xf32>
    %c0_3 = arith.constant 0 : index
    %c0_4 = arith.constant 0 : index
    %3 = vector.load %arg3[%c0_3, %c0_4] : memref<8x32xbf16, #tpu.memory_space<vmem>>, vector<8x32xbf16>
    %4 = arith.extf %3 : vector<8x32xbf16> to vector<8x32xf32>
    %5 = arith.addf %2, %4 : vector<8x32xf32>
    %cst_5 = arith.constant 0.000000e+00 : f32
    %6 = vector.broadcast %cst_5 : f32 to vector<8x32xf32>
    %7 = arith.maximumf %5, %6 : vector<8x32xf32>
    %8 = arith.truncf %7 : vector<8x32xf32> to vector<8x32xbf16>
    %c0_6 = arith.constant 0 : index
    %c0_7 = arith.constant 0 : index
    %9 = vector.load %arg4[%c0_6, %c0_7] : memref<32x128xbf16, #tpu.memory_space<vmem>>, vector<32x128xbf16>
    %cst_8 = arith.constant dense<0.000000e+00> : vector<8x128xf32>
    %10 = tpu.matmul %8, %9, %cst_8 {dimension_numbers = #tpu.dot_dimension_numbers<[1], [0], [0], [1], [0, 0, 1, 1], [], []>} : vector<8x32xbf16>, vector<32x128xbf16>, vector<8x128xf32> -> vector<8x128xf32>
    %c0_9 = arith.constant 0 : index
    %c0_10 = arith.constant 0 : index
    %11 = vector.load %arg5[%c0_9, %c0_10] : memref<8x128xbf16, #tpu.memory_space<vmem>>, vector<8x128xbf16>
    %12 = arith.extf %11 : vector<8x128xbf16> to vector<8x128xf32>
    %13 = arith.addf %10, %12 : vector<8x128xf32>
    %c0_11 = arith.constant 0 : index
    %c0_12 = arith.constant 0 : index
    %14 = vector.load %arg6[%c0_11, %c0_12] : memref<8x128xf32, #tpu.memory_space<vmem>>, vector<8x128xf32>
    tpu.vector_store %arg6[%c0_11, %c0_12], %13 {strides = array<i32>} : memref<8x128xf32, #tpu.memory_space<vmem>>, vector<8x128xf32>,
    return
  }
  func.func @transform_0(%arg0: i32) -> (i32, i32) {
    %c0_i32 = arith.constant 0 : i32
    %c0_i32_0 = arith.constant 0 : i32
    return %arg0, %c0_i32 : i32, i32
  }
  func.func @transform_1(%arg0: i32) -> (i32, i32) {
    %c0_i32 = arith.constant 0 : i32
    %c0_i32_0 = arith.constant 0 : i32
    %c0_i32_1 = arith.constant 0 : i32
    return %c0_i32, %c0_i32_0 : i32, i32
  }
  func.func @transform_2(%arg0: i32) -> (i32, i32) {
    %c0_i32 = arith.constant 0 : i32
    %c0_i32_0 = arith.constant 0 : i32
    return %arg0, %c0_i32 : i32, i32
  }
  func.func @transform_3(%arg0: i32) -> (i32, i32) {
    %c0_i32 = arith.constant 0 : i32
    %c0_i32_0 = arith.constant 0 : i32
    %c0_i32_1 = arith.constant 0 : i32
    return %c0_i32, %c0_i32_0 : i32, i32
  }
  func.func @transform_4(%arg0: i32) -> (i32, i32) {
    %c0_i32 = arith.constant 0 : i32
    %c0_i32_0 = arith.constant 0 : i32
    return %arg0, %c0_i32 : i32, i32
  }
  func.func @transform_5(%arg0: i32) -> (i32, i32) {
    %c0_i32 = arith.constant 0 : i32
    %c0_i32_0 = arith.constant 0 : i32
    return %arg0, %c0_i32 : i32, i32
  }
}

</mosaic_0001>

<llo_original>
// kernel: neural_network_forward.1
$region0: #{neural_network_forward.1}
  #allocation0 [shape = 'u32[]', space=smem, size = 0x4, offset = 0x4, fixed_abs, tag = 'smem constant byte address 0x4 - core index']
  #allocation1 [shape = 'u32[144,128]{1,0:T(1,128)}', space=vmem, size = 0x12000, scoped, tag = 'internal scratch']
  %s0 = inlined_call_operand.vmem [shape: bf16[8,16], index: 0, kind: input, shape index: {}]
  %s1 = inlined_call_operand.hbm [shape: bf16[16,32], index: 1, kind: input, shape index: {}]
  %s2 = inlined_call_operand.vmem [shape: bf16[8,32], index: 2, kind: input, shape index: {}]
  %s3 = inlined_call_operand.vmem [shape: bf16[32,128], index: 3, kind: input, shape index: {}]
  %s4 = inlined_call_operand.vmem [shape: bf16[8,128], index: 4, kind: input, shape index: {}]
  %s5 = inlined_call_operand.hbm [shape: f32[8,128], index: 5, kind: output, shape index: {}]
  %s6 = sld [smem:[#allocation0]]
  $region34: #{neural_network_forward.1} parent=0
    _
  %s8 = ssub.s32 1, %s6
  %s9 = scalar_select 0, %s8, %s6
  $region1: #{neural_network_forward.1} parent=0
    #allocation2 [shape = 'u8[4096]{0}', space=vmem, size = 0x1000, scoped, tag = 'input window, operand 1, single buffered']
    #allocation3 [shape = 's32[1]{0}', space=sflag, size = 0x4, scoped, tag = 'scoped memory for neural_network_forward.1']
    #allocation4 [shape = 's32[1]{0}', space=sflag, size = 0x4, scoped, tag = 'scoped memory for neural_network_forward.1']
    #allocation5 [shape = 'u8[4096]{0}', space=vmem, size = 0x1000, scoped, tag = 'output window, operand 0, single buffered']
    %10 = vsyncpa [#allocation3], 0
    %11 = vsyncpa [#allocation4], 0
    // Predicated region
    $region2: #{neural_network_forward.1} parent=1 // pred_check
      _
    $region3: #{neural_network_forward.1} parent=1 // pred_check_branch
      %13 = sbr.rel (0) target = $region5
    $region4: #{neural_network_forward.1} parent=1 // pred_region
      _
    $region5: #{neural_network_forward.1} parent=1 // pred_fallthru
      _
    // Predicated region
    $region6: #{neural_network_forward.1} parent=1 // pred_check
      _
    $region7: #{neural_network_forward.1} parent=1 // pred_check_branch
      %15 = sbr.rel (0) target = $region9
    $region8: #{neural_network_forward.1} parent=1 // pred_region
      %s17 = ssub.s32 128, 128
      %18 = vsyncadd [#allocation3], %s17
      %s19 = sshll.u32 [#allocation2], 4
      %s20 = int_to_ptr.vmem [resolvable:$true] %s19
      %25 = dma.hbm_to_vmem [thread:$0]  %s1, 128, %s20, [#allocation3], 64, 64, 4
    $region9: #{neural_network_forward.1} parent=1 // pred_fallthru
      _
    // Predicated region
    $region10: #{neural_network_forward.1} parent=1 // pred_check
      _
    $region11: #{neural_network_forward.1} parent=1 // pred_check_branch
      %27 = sbr.rel (0) target = $region13
    $region12: #{neural_network_forward.1} parent=1 // pred_region
      _
    $region13: #{neural_network_forward.1} parent=1 // pred_fallthru
      _
    // Predicated region
    $region14: #{neural_network_forward.1} parent=1 // pred_check
      _
    $region15: #{neural_network_forward.1} parent=1 // pred_check_branch
      %29 = sbr.rel (0) target = $region17
    $region16: #{neural_network_forward.1} parent=1 // pred_region
      _
    $region17: #{neural_network_forward.1} parent=1 // pred_fallthru
      _
    // Predicated region
    $region18: #{neural_network_forward.1} parent=1 // pred_check
      _
    $region19: #{neural_network_forward.1} parent=1 // pred_check_branch
      %31 = sbr.rel (0) target = $region21
    $region20: #{neural_network_forward.1} parent=1 // pred_region
      _
    $region21: #{neural_network_forward.1} parent=1 // pred_fallthru
      _
    // Predicated region
    $region22: #{neural_network_forward.1} parent=1 // pred_check
      _
    $region23: #{neural_network_forward.1} parent=1 // pred_check_branch
      %33 = sbr.rel (0) target = $region25
    $region24: #{neural_network_forward.1} parent=1 // pred_region
      %34 = dma.done [#allocation3], 128
    $region25: #{neural_network_forward.1} parent=1 // pred_fallthru
      _
    %v36 = vld [vmem:[%s0] sm:$0xf]
    %v37 = vld [vmem:[#allocation2] sm:$0xf]
    %v38 = vld [vmem:[#allocation2 + $0x4] sm:$0xf]
    %v39 = vld [vmem:[%s2] sm:$0xf]
    %v40 = vunpack.c.l.bf16 %v39
    %v43 = vunpack.c.l.b16 %v37
    %v44 = vunpack.c.l.b16 %v38
    %v45 = vpack.c.b16 %v44, %v43
    %vm47 = vcmask 130048
    %v49 = vsel %vm47, %v36, 0
    %51 = vmatprep.subr.bf16.mxu0 0
    %52 = vmatpush1.bf16.msra.mxu0 %v45
    %53 = vmatprep.subr.bf16.mxu0 0
    %54 = vmatpush1.bf16.msra.mxu0 0
    %55 = vmatprep.subr.bf16.mxu0 0
    %56 = vmatpush1.bf16.msra.mxu0 0
    %57 = vmatprep.subr.bf16.mxu0 0
    %58 = vmatpush1.bf16.msra.mxu0 0
    %59 = vmatprep.subr.bf16.mxu0 0
    %60 = vmatpush1.bf16.msra.mxu0 0
    %61 = vmatprep.subr.bf16.mxu0 0
    %62 = vmatpush1.bf16.msra.mxu0 0
    %63 = vmatprep.subr.bf16.mxu0 0
    %64 = vmatpush1.bf16.msra.mxu0 0
    %65 = vmatprep.subr.bf16.mxu0 0
    %66 = vmatpush1.bf16.msra.mxu0 0
    %67 = vmatprep.subr.bf16.mxu0 0
    %68 = vmatpush1.bf16.msra.mxu0 0
    %69 = vmatprep.subr.bf16.mxu0 0
    %70 = vmatpush1.bf16.msra.mxu0 0
    %71 = vmatprep.subr.bf16.mxu0 0
    %72 = vmatpush1.bf16.msra.mxu0 0
    %73 = vmatprep.subr.bf16.mxu0 0
    %74 = vmatpush1.bf16.msra.mxu0 0
    %75 = vmatprep.subr.bf16.mxu0 0
    %76 = vmatpush1.bf16.msra.mxu0 0
    %77 = vmatprep.subr.bf16.mxu0 0
    %78 = vmatpush1.bf16.msra.mxu0 0
    %79 = vmatprep.subr.bf16.mxu0 0
    %80 = vmatpush1.bf16.msra.mxu0 0
    %81 = vmatprep.subr.bf16.mxu0 0
    %82 = vmatpush1.bf16.msra.mxu0 0
    %83 = vmatprep.mubr.bf16.mxu0 0
    %84 = vmatmul.mubr.bf16.gmra.mrb[0].mxu0 %v49
    %v85 = vpop.f32.mrb[0].mxu0
    %v86 = vadd.f32 %v40, %v85
    %v87 = vpop.f32.mrb[0].mxu0
    %v88 = vpop.f32.mrb[0].mxu0
    %v89 = vpop.f32.mrb[0].mxu0
    %90 = vdwg.mxu0
    %v91 = vmax.f32 %v86, 0.0
    %v92 = vpack.c.bf16 %v91, %v91
    %v93 = vld [vmem:[%s3] sm:$0xf]
    %v94 = vld [vmem:[%s3 + $0x4] sm:$0xf]
    %v95 = vld [vmem:[%s3 + $0x8] sm:$0xf]
    %v96 = vld [vmem:[%s3 + $0xc] sm:$0xf]
    %v97 = vld [vmem:[%s4] sm:$0xf]
    %v98 = vunpack.c.l.bf16 %v97
    %v103 = vunpack.c.l.b16 %v93
    %v104 = vunpack.c.l.b16 %v94
    %v105 = vunpack.c.l.b16 %v95
    %v106 = vunpack.c.l.b16 %v96
    %v107 = vpack.c.b16 %v104, %v103
    %v108 = vpack.c.b16 %v106, %v105
    %vm111 = vcmask 261120
    %v113 = vsel %vm111, %v92, 0
    %115 = vmatprep.subr.bf16.mxu0 0
    %116 = vmatpush1.bf16.msra.mxu0 %v107
    %117 = vmatprep.subr.bf16.mxu0 0
    %118 = vmatpush1.bf16.msra.mxu0 %v108
    %119 = vmatprep.subr.bf16.mxu0 0
    %120 = vmatpush1.bf16.msra.mxu0 0
    %121 = vmatprep.subr.bf16.mxu0 0
    %122 = vmatpush1.bf16.msra.mxu0 0
    %123 = vmatprep.subr.bf16.mxu0 0
    %124 = vmatpush1.bf16.msra.mxu0 0
    %125 = vmatprep.subr.bf16.mxu0 0
    %126 = vmatpush1.bf16.msra.mxu0 0
    %127 = vmatprep.subr.bf16.mxu0 0
    %128 = vmatpush1.bf16.msra.mxu0 0
    %129 = vmatprep.subr.bf16.mxu0 0
    %130 = vmatpush1.bf16.msra.mxu0 0
    %131 = vmatprep.subr.bf16.mxu0 0
    %132 = vmatpush1.bf16.msra.mxu0 0
    %133 = vmatprep.subr.bf16.mxu0 0
    %134 = vmatpush1.bf16.msra.mxu0 0
    %135 = vmatprep.subr.bf16.mxu0 0
    %136 = vmatpush1.bf16.msra.mxu0 0
    %137 = vmatprep.subr.bf16.mxu0 0
    %138 = vmatpush1.bf16.msra.mxu0 0
    %139 = vmatprep.subr.bf16.mxu0 0
    %140 = vmatpush1.bf16.msra.mxu0 0
    %141 = vmatprep.subr.bf16.mxu0 0
    %142 = vmatpush1.bf16.msra.mxu0 0
    %143 = vmatprep.subr.bf16.mxu0 0
    %144 = vmatpush1.bf16.msra.mxu0 0
    %145 = vmatprep.subr.bf16.mxu0 0
    %146 = vmatpush1.bf16.msra.mxu0 0
    %147 = vmatprep.mubr.bf16.mxu0 0
    %148 = vmatmul.mubr.bf16.gmra.mrb[0].mxu0 %v113
    %v149 = vpop.f32.mrb[0].mxu0
    %v150 = vadd.f32 %v98, %v149
    %v151 = vpop.f32.mrb[0].mxu0
    %v152 = vpop.f32.mrb[0].mxu0
    %v153 = vpop.f32.mrb[0].mxu0
    %154 = vdwg.mxu0
    %155 = vst [vmem:[#allocation5] sm:$0xff] %v150
    // Predicated region
    $region26: #{neural_network_forward.1} parent=1 // pred_check
      _
    $region27: #{neural_network_forward.1} parent=1 // pred_check_branch
      %157 = sbr.rel (0) target = $region29
    $region28: #{neural_network_forward.1} parent=1 // pred_region
      %s159 = ssub.s32 128, 128
      %160 = vsyncadd [#allocation4], %s159
      %s162 = sshll.u32 [#allocation5], 4
      %s163 = int_to_ptr.vmem [resolvable:$true] %s162
      %165 = dma.vmem_to_hbm [thread:$0]  %s163, 128, %s5, [#allocation4]
    $region29: #{neural_network_forward.1} parent=1 // pred_fallthru
      _
    // Predicated region
    $region30: #{neural_network_forward.1} parent=1 // pred_check
      _
    $region31: #{neural_network_forward.1} parent=1 // pred_check_branch
      %167 = sbr.rel (0) target = $region33
    $region32: #{neural_network_forward.1} parent=1 // pred_region
      %168 = dma.done [#allocation4], 128
    $region33: #{neural_network_forward.1} parent=1 // pred_fallthru
      _
    %169 = vsyncpa [#allocation3], 1
    %170 = vsyncpa [#allocation4], 1

</llo_original>
